<compile_context>
chip_gen: v7x
topology: tpu7x:2x2x1
jax: 0.10.0
libtpu: 0.0.40
codegen_flags: <defaults>
</compile_context>

<pallas_src>
import functools

import jax
import jax.numpy as jnp
from jax.experimental import pallas as pl
from jax.experimental.pallas import tpu as pltpu

_LANE = 128
_SUBLANE = 8


def _round_up(x, m):
    return (x + m - 1) // m * m


def _leaky_relu(x, negative_slope=0.01):
    return jnp.where(x >= 0, x, negative_slope * x)


def actor_forward_kernel(state_ref,
                         w1_ref, b1_ref,
                         w2_ref, b2_ref,
                         w3_ref, b3_ref,
                         out_ref):
    """Fused 3-layer MLP on one batch tile: (TB,S)->(TB,H1)->(TB,H2)->(TB,Apad).

    Weights arrive in bf16; matmuls accumulate in f32 on the MXU; all
    elementwise work (bias add, leaky_relu, tanh) is done in f32.
    """
    x = state_ref[...].astype(jnp.bfloat16)

    # fc1 + leaky_relu
    h1 = jnp.dot(x, w1_ref[...], preferred_element_type=jnp.float32)
    h1 = _leaky_relu(h1 + b1_ref[...].astype(jnp.float32))

    # fc2 + leaky_relu
    h2 = jnp.dot(h1.astype(jnp.bfloat16), w2_ref[...],
                 preferred_element_type=jnp.float32)
    h2 = _leaky_relu(h2 + b2_ref[...].astype(jnp.float32))

    # fc3 + tanh
    h3 = jnp.dot(h2.astype(jnp.bfloat16), w3_ref[...],
                 preferred_element_type=jnp.float32)
    out_ref[...] = jnp.tanh(h3 + b3_ref[...].astype(jnp.float32)).astype(out_ref.dtype)


@functools.partial(jax.jit, static_argnames=("block_batch",))
def actor_forward(state, w1, b1, w2, b2, w3, b3, *, block_batch=None):
    """Pallas Actor forward. state: [B, state_size] f32. Returns [B, action_size] f32."""
    batch, state_size = state.shape
    fc1_units = w1.shape[1]
    fc2_units = w2.shape[1]
    action_size = w3.shape[1]

    # ---- lane-dense output: pad action dim up to a multiple of 128 ----------
    a_pad = _round_up(action_size, _LANE)
    if a_pad != action_size:
        w3 = jnp.pad(w3, ((0, 0), (0, a_pad - action_size)))
        b3 = jnp.pad(b3, ((0, 0), (0, a_pad - action_size)))

    # ---- bf16 weights for the MXU (biases stay f32) --------------------------
    w1b = w1.astype(jnp.bfloat16)
    w2b = w2.astype(jnp.bfloat16)
    w3b = w3.astype(jnp.bfloat16)

    # ---- batch tiling ---------------------------------------------------------
    if block_batch is None:
        # Big tiles amortize the ~0.35us/step overhead; small batches get one tile.
        block_batch = min(1024, _round_up(batch, _SUBLANE))
    tb = _round_up(block_batch, _SUBLANE)
    b_pad = _round_up(batch, tb)
    if b_pad != batch:
        state = jnp.pad(state, ((0, b_pad - batch), (0, 0)))
    grid = (b_pad // tb,)

    # state/output march over the batch grid; weights/biases stay resident
    # (constant block index -> DMA'd into VMEM once, reused every step).
    resident = lambda arr: pl.BlockSpec(arr.shape, lambda i: (0,) * arr.ndim)

    cost = pl.CostEstimate(
        flops=2 * b_pad * (state_size * fc1_units
                           + fc1_units * fc2_units
                           + fc2_units * a_pad),
        transcendentals=b_pad * a_pad,
        bytes_accessed=(b_pad * state_size * 4 + b_pad * a_pad * 4
                        + w1b.size * 2 + w2b.size * 2 + w3b.size * 2
                        + (b1.size + b2.size + b3.size) * 4),
    )

    out_padded = pl.pallas_call(
        actor_forward_kernel,
        out_shape=jax.ShapeDtypeStruct((b_pad, a_pad), jnp.float32),
        grid=grid,
        in_specs=[
            pl.BlockSpec((tb, state_size), lambda i: (i, 0)),
            resident(w1b), resident(b1),
            resident(w2b), resident(b2),
            resident(w3b), resident(b3),
        ],
        out_specs=pl.BlockSpec((tb, a_pad), lambda i: (i, 0)),
        compiler_params=pltpu.CompilerParams(
            dimension_semantics=("parallel",),   # batch-parallel -> megacore on v7x
        ),
        cost_estimate=cost,
    )(state, w1b, b1, w2b, b2, w3b, b3)

    return out_padded[:batch, :action_size]


def init_actor_params(key, state_size, action_size, fc1_units=64, fc2_units=64):
    """Deterministic init mirroring Actor.reset_parameters():
       - fc1/fc2 weights ~ U(-1/sqrt(fan_in), 1/sqrt(fan_in))
       - fc3 weights ~ U(-0.003, 0.003)
       - biases keep PyTorch Linear default: U(-1/sqrt(fan_in), 1/sqrt(fan_in))
       Weights returned in [in, out] layout (transposed vs. PyTorch)."""
    k1, k2, k3, kb1, kb2, kb3 = jax.random.split(key, 6)

    lim1 = 1.0 / jnp.sqrt(float(state_size))
    lim2 = 1.0 / jnp.sqrt(float(fc1_units))
    lim3 = 1.0 / jnp.sqrt(float(fc2_units))

    w1 = jax.random.uniform(k1, (state_size, fc1_units), jnp.float32, -lim1, lim1)
    b1 = jax.random.uniform(kb1, (1, fc1_units), jnp.float32, -lim1, lim1)

    w2 = jax.random.uniform(k2, (fc1_units, fc2_units), jnp.float32, -lim2, lim2)
    b2 = jax.random.uniform(kb2, (1, fc2_units), jnp.float32, -lim2, lim2)

    w3 = jax.random.uniform(k3, (fc2_units, action_size), jnp.float32, -0.003, 0.003)
    b3 = jax.random.uniform(kb3, (1, action_size), jnp.float32, -lim3, lim3)

    return w1, b1, w2, b2, w3, b3


def actor_forward_ref_bf16(state, w1, b1, w2, b2, w3, b3):
    """Pure-JAX reference mirroring the kernel's bf16-input / f32-accumulate math."""
    x = state.astype(jnp.bfloat16)
    h1 = _leaky_relu(jnp.dot(x, w1.astype(jnp.bfloat16),
                             preferred_element_type=jnp.float32) + b1)
    h2 = _leaky_relu(jnp.dot(h1.astype(jnp.bfloat16), w2.astype(jnp.bfloat16),
                             preferred_element_type=jnp.float32) + b2)
    h3 = jnp.dot(h2.astype(jnp.bfloat16), w3.astype(jnp.bfloat16),
                 preferred_element_type=jnp.float32) + b3
    return jnp.tanh(h3)


def actor_forward_ref_f32(state, w1, b1, w2, b2, w3, b3):
    """Pure-f32 reference matching the PyTorch module semantics exactly."""
    h1 = jax.nn.leaky_relu(state @ w1 + b1, negative_slope=0.01)
    h2 = jax.nn.leaky_relu(h1 @ w2 + b2, negative_slope=0.01)
    return jnp.tanh(h2 @ w3 + b3)


if __name__ == "__main__":
    state_size = 16
    action_size = 4
    fc1_units = 64
    fc2_units = 64

    key = jax.random.PRNGKey(0)
    k_state, k_state2, k_params = jax.random.split(key, 3)
    params = init_actor_params(k_params, state_size, action_size, fc1_units, fc2_units)

    # Small-batch case (single grid step).
    batch = 8
    state = jax.random.normal(k_state, (batch, state_size), dtype=jnp.float32)
    out = jax.block_until_ready(actor_forward(state, *params))
    assert out.shape == (batch, action_size), out.shape
    ref_bf16 = actor_forward_ref_bf16(state, *params)
    ref_f32 = actor_forward_ref_f32(state, *params)
    assert jnp.allclose(out, ref_bf16, atol=1e-4, rtol=1e-4), "mismatch vs bf16 reference"
    assert jnp.allclose(out, ref_f32, atol=2e-2, rtol=2e-2), "mismatch vs f32 reference"

    # Larger, non-multiple batch: exercises batch padding + multi-step pipelined grid.
    batch2 = 200
    state2 = jax.random.normal(k_state2, (batch2, state_size), dtype=jnp.float32)
    out2 = jax.block_until_ready(actor_forward(state2, *params, block_batch=64))
    assert out2.shape == (batch2, action_size), out2.shape
    ref2 = actor_forward_ref_bf16(state2, *params)
    assert jnp.allclose(out2, ref2, atol=1e-4, rtol=1e-4), "mismatch vs bf16 reference (tiled)"

    print("KERNEL_OK")
</pallas_src>

<mosaic_0001>
module attributes {stable_mosaic.version = 11 : i64} {
  func.func @actor_forward_kernel(%arg0: i32, %arg1: memref<8x16xf32, #tpu.memory_space<vmem>>, %arg2: memref<16x64xbf16, #tpu.memory_space<vmem>>, %arg3: memref<1x64xf32, #tpu.memory_space<vmem>>, %arg4: memref<64x64xbf16, #tpu.memory_space<vmem>>, %arg5: memref<1x64xf32, #tpu.memory_space<vmem>>, %arg6: memref<64x128xbf16, #tpu.memory_space<vmem>>, %arg7: memref<1x128xf32, #tpu.memory_space<vmem>>, %arg8: memref<8x128xf32, #tpu.memory_space<vmem>>) attributes {dimension_semantics = [#tpu.dimension_semantics<parallel>], iteration_bounds = array<i64: 1>, scalar_prefetch = 0 : i64, scratch_operands = 0 : i64, tpu.core_type = #tpu.core_type<tc>, window_params = [{transform_indices = @transform_0, window_bounds = array<i64: 8, 16>}, {pipeline_mode = #tpu.pipeline_mode<synchronous>, transform_indices = @transform_1, window_bounds = array<i64: 16, 64>}, {pipeline_mode = #tpu.pipeline_mode<synchronous>, transform_indices = @transform_2, window_bounds = array<i64: 1, 64>}, {pipeline_mode = #tpu.pipeline_mode<synchronous>, transform_indices = @transform_3, window_bounds = array<i64: 64, 64>}, {pipeline_mode = #tpu.pipeline_mode<synchronous>, transform_indices = @transform_4, window_bounds = array<i64: 1, 64>}, {pipeline_mode = #tpu.pipeline_mode<synchronous>, transform_indices = @transform_5, window_bounds = array<i64: 64, 128>}, {pipeline_mode = #tpu.pipeline_mode<synchronous>, transform_indices = @transform_6, window_bounds = array<i64: 1, 128>}, {transform_indices = @transform_7, window_bounds = array<i64: 8, 128>}]} {
    %c0 = arith.constant 0 : index
    %c0_0 = arith.constant 0 : index
    %0 = vector.load %arg1[%c0, %c0_0] : memref<8x16xf32, #tpu.memory_space<vmem>>, vector<8x16xf32>
    %1 = arith.truncf %0 : vector<8x16xf32> to vector<8x16xbf16>
    %c0_1 = arith.constant 0 : index
    %c0_2 = arith.constant 0 : index
    %2 = vector.load %arg2[%c0_1, %c0_2] : memref<16x64xbf16, #tpu.memory_space<vmem>>, vector<16x64xbf16>
    %cst = arith.constant dense<0.000000e+00> : vector<8x64xf32>
    %3 = tpu.matmul %1, %2, %cst {dimension_numbers = #tpu.dot_dimension_numbers<[1], [0], [0], [1], [0, 0, 1, 1], [], []>} : vector<8x16xbf16>, vector<16x64xbf16>, vector<8x64xf32> -> vector<8x64xf32>
    %c0_3 = arith.constant 0 : index
    %c0_4 = arith.constant 0 : index
    %4 = vector.load %arg3[%c0_3, %c0_4] : memref<1x64xf32, #tpu.memory_space<vmem>>, vector<1x64xf32>
    %5 = vector.broadcast %4 : vector<1x64xf32> to vector<8x64xf32>
    %6 = arith.addf %3, %5 : vector<8x64xf32>
    %cst_5 = arith.constant 0.000000e+00 : f32
    %7 = vector.broadcast %cst_5 : f32 to vector<8x64xf32>
    %8 = arith.cmpf oge, %6, %7 : vector<8x64xf32>
    %cst_6 = arith.constant 0.00999999977 : f32
    %9 = vector.broadcast %cst_6 : f32 to vector<8x64xf32>
    %10 = arith.mulf %9, %6 : vector<8x64xf32>
    %11 = arith.select %8, %6, %10 : vector<8x64xi1>, vector<8x64xf32>
    %12 = arith.truncf %11 : vector<8x64xf32> to vector<8x64xbf16>
    %c0_7 = arith.constant 0 : index
    %c0_8 = arith.constant 0 : index
    %13 = vector.load %arg4[%c0_7, %c0_8] : memref<64x64xbf16, #tpu.memory_space<vmem>>, vector<64x64xbf16>
    %cst_9 = arith.constant dense<0.000000e+00> : vector<8x64xf32>
    %14 = tpu.matmul %12, %13, %cst_9 {dimension_numbers = #tpu.dot_dimension_numbers<[1], [0], [0], [1], [0, 0, 1, 1], [], []>} : vector<8x64xbf16>, vector<64x64xbf16>, vector<8x64xf32> -> vector<8x64xf32>
    %c0_10 = arith.constant 0 : index
    %c0_11 = arith.constant 0 : index
    %15 = vector.load %arg5[%c0_10, %c0_11] : memref<1x64xf32, #tpu.memory_space<vmem>>, vector<1x64xf32>
    %16 = vector.broadcast %15 : vector<1x64xf32> to vector<8x64xf32>
    %17 = arith.addf %14, %16 : vector<8x64xf32>
    %cst_12 = arith.constant 0.000000e+00 : f32
    %18 = vector.broadcast %cst_12 : f32 to vector<8x64xf32>
    %19 = arith.cmpf oge, %17, %18 : vector<8x64xf32>
    %cst_13 = arith.constant 0.00999999977 : f32
    %20 = vector.broadcast %cst_13 : f32 to vector<8x64xf32>
    %21 = arith.mulf %20, %17 : vector<8x64xf32>
    %22 = arith.select %19, %17, %21 : vector<8x64xi1>, vector<8x64xf32>
    %23 = arith.truncf %22 : vector<8x64xf32> to vector<8x64xbf16>
    %c0_14 = arith.constant 0 : index
    %c0_15 = arith.constant 0 : index
    %24 = vector.load %arg6[%c0_14, %c0_15] : memref<64x128xbf16, #tpu.memory_space<vmem>>, vector<64x128xbf16>
    %cst_16 = arith.constant dense<0.000000e+00> : vector<8x128xf32>
    %25 = tpu.matmul %23, %24, %cst_16 {dimension_numbers = #tpu.dot_dimension_numbers<[1], [0], [0], [1], [0, 0, 1, 1], [], []>} : vector<8x64xbf16>, vector<64x128xbf16>, vector<8x128xf32> -> vector<8x128xf32>
    %c0_17 = arith.constant 0 : index
    %c0_18 = arith.constant 0 : index
    %26 = vector.load %arg7[%c0_17, %c0_18] : memref<1x128xf32, #tpu.memory_space<vmem>>, vector<1x128xf32>
    %27 = vector.broadcast %26 : vector<1x128xf32> to vector<8x128xf32>
    %28 = arith.addf %25, %27 : vector<8x128xf32>
    %29 = math.tanh %28 : vector<8x128xf32>
    %c0_19 = arith.constant 0 : index
    %c0_20 = arith.constant 0 : index
    %30 = vector.load %arg8[%c0_19, %c0_20] : memref<8x128xf32, #tpu.memory_space<vmem>>, vector<8x128xf32>
    tpu.vector_store %arg8[%c0_19, %c0_20], %29 {strides = array<i32>} : memref<8x128xf32, #tpu.memory_space<vmem>>, vector<8x128xf32>,
    return
  }
  func.func @transform_0(%arg0: i32) -> (i32, i32) {
    %c0_i32 = arith.constant 0 : i32
    %c0_i32_0 = arith.constant 0 : i32
    return %arg0, %c0_i32 : i32, i32
  }
  func.func @transform_1(%arg0: i32) -> (i32, i32) {
    %c0_i32 = arith.constant 0 : i32
    %c0_i32_0 = arith.constant 0 : i32
    %c0_i32_1 = arith.constant 0 : i32
    return %c0_i32, %c0_i32_0 : i32, i32
  }
  func.func @transform_2(%arg0: i32) -> (i32, i32) {
    %c0_i32 = arith.constant 0 : i32
    %c0_i32_0 = arith.constant 0 : i32
    %c0_i32_1 = arith.constant 0 : i32
    return %c0_i32, %c0_i32_0 : i32, i32
  }
  func.func @transform_3(%arg0: i32) -> (i32, i32) {
    %c0_i32 = arith.constant 0 : i32
    %c0_i32_0 = arith.constant 0 : i32
    %c0_i32_1 = arith.constant 0 : i32
    return %c0_i32, %c0_i32_0 : i32, i32
  }
  func.func @transform_4(%arg0: i32) -> (i32, i32) {
    %c0_i32 = arith.constant 0 : i32
    %c0_i32_0 = arith.constant 0 : i32
    %c0_i32_1 = arith.constant 0 : i32
    return %c0_i32, %c0_i32_0 : i32, i32
  }
  func.func @transform_5(%arg0: i32) -> (i32, i32) {
    %c0_i32 = arith.constant 0 : i32
    %c0_i32_0 = arith.constant 0 : i32
    %c0_i32_1 = arith.constant 0 : i32
    return %c0_i32, %c0_i32_0 : i32, i32
  }
  func.func @transform_6(%arg0: i32) -> (i32, i32) {
    %c0_i32 = arith.constant 0 : i32
    %c0_i32_0 = arith.constant 0 : i32
    %c0_i32_1 = arith.constant 0 : i32
    return %c0_i32, %c0_i32_0 : i32, i32
  }
  func.func @transform_7(%arg0: i32) -> (i32, i32) {
    %c0_i32 = arith.constant 0 : i32
    %c0_i32_0 = arith.constant 0 : i32
    return %arg0, %c0_i32 : i32, i32
  }
}

</mosaic_0001>

<llo_original>
// kernel: actor_forward.1
$region0: #{actor_forward.1}
  #allocation0 [shape = 'u32[]', space=smem, size = 0x4, offset = 0x4, fixed_abs, tag = 'smem constant byte address 0x4 - core index']
  #allocation1 [shape = 'u32[144,128]{1,0:T(1,128)}', space=vmem, size = 0x12000, scoped, tag = 'internal scratch']
  %s0 = inlined_call_operand.vmem [shape: f32[8,16], index: 0, kind: input, shape index: {}]
  %s1 = inlined_call_operand.vmem [shape: bf16[16,64], index: 1, kind: input, shape index: {}]
  %s2 = inlined_call_operand.vmem [shape: f32[1,64], index: 2, kind: input, shape index: {}]
  %s3 = inlined_call_operand.vmem [shape: bf16[64,64], index: 3, kind: input, shape index: {}]
  %s4 = inlined_call_operand.vmem [shape: f32[1,64], index: 4, kind: input, shape index: {}]
  %s5 = inlined_call_operand.vmem [shape: bf16[64,128], index: 5, kind: input, shape index: {}]
  %s6 = inlined_call_operand.vmem [shape: f32[1,128], index: 6, kind: input, shape index: {}]
  %s7 = inlined_call_operand.vmem [shape: f32[8,128], index: 7, kind: output, shape index: {}]
  %s8 = sld [smem:[#allocation0]]
  $region38: #{actor_forward.1} parent=0
    _
  %s10 = ssub.s32 1, %s8
  %s11 = scalar_select 0, %s10, %s8
  // Predicated region
  $region2: #{actor_forward.1} parent=0 // pred_check
    _
  $region3: #{actor_forward.1} parent=0 // pred_check_branch
    %13 = sbr.rel (0) target = $region5
  $region4: #{actor_forward.1} parent=0 // pred_region
    _
  $region5: #{actor_forward.1} parent=0 // pred_fallthru
    _
  // Predicated region
  $region6: #{actor_forward.1} parent=0 // pred_check
    _
  $region7: #{actor_forward.1} parent=0 // pred_check_branch
    %15 = sbr.rel (0) target = $region9
  $region8: #{actor_forward.1} parent=0 // pred_region
    _
  $region9: #{actor_forward.1} parent=0 // pred_fallthru
    _
  // Predicated region
  $region10: #{actor_forward.1} parent=0 // pred_check
    _
  $region11: #{actor_forward.1} parent=0 // pred_check_branch
    %17 = sbr.rel (0) target = $region13
  $region12: #{actor_forward.1} parent=0 // pred_region
    _
  $region13: #{actor_forward.1} parent=0 // pred_fallthru
    _
  // Predicated region
  $region14: #{actor_forward.1} parent=0 // pred_check
    _
  $region15: #{actor_forward.1} parent=0 // pred_check_branch
    %19 = sbr.rel (0) target = $region17
  $region16: #{actor_forward.1} parent=0 // pred_region
    _
  $region17: #{actor_forward.1} parent=0 // pred_fallthru
    _
  // Predicated region
  $region18: #{actor_forward.1} parent=0 // pred_check
    _
  $region19: #{actor_forward.1} parent=0 // pred_check_branch
    %21 = sbr.rel (0) target = $region21
  $region20: #{actor_forward.1} parent=0 // pred_region
    _
  $region21: #{actor_forward.1} parent=0 // pred_fallthru
    _
  // Predicated region
  $region22: #{actor_forward.1} parent=0 // pred_check
    _
  $region23: #{actor_forward.1} parent=0 // pred_check_branch
    %23 = sbr.rel (0) target = $region25
  $region24: #{actor_forward.1} parent=0 // pred_region
    _
  $region25: #{actor_forward.1} parent=0 // pred_fallthru
    _
  // Predicated region
  $region26: #{actor_forward.1} parent=0 // pred_check
    _
  $region27: #{actor_forward.1} parent=0 // pred_check_branch
    %25 = sbr.rel (0) target = $region29
  $region28: #{actor_forward.1} parent=0 // pred_region
    _
  $region29: #{actor_forward.1} parent=0 // pred_fallthru
    _
  %v27 = vld [vmem:[%s0] sm:$0xff]
  %v28 = vpack.c.bf16 %v27, %v27
  %v29 = vld [vmem:[%s1] sm:$0xf]
  %v30 = vld [vmem:[%s1 + $0x4] sm:$0xf]
  %v31 = vld [vmem:[%s2] sm:$0x1]
  %v33 = vlaneseq
  %v34 = vshrl.u32 %v33, 7
  %v35 = vsub.s32 0, %v34
  %v36 = vrot.slane %v31, %v35
  %v40 = vunpack.c.l.b16 %v29
  %v41 = vunpack.c.l.b16 %v30
  %v42 = vpack.c.b16 %v41, %v40
  %vm44 = vcmask 130048
  %v46 = vsel %vm44, %v28, 0
  %48 = vmatprep.subr.bf16.mxu0 0
  %49 = vmatpush1.bf16.msra.mxu0 %v42
  %50 = vmatprep.subr.bf16.mxu0 0
  %51 = vmatpush1.bf16.msra.mxu0 0
  %52 = vmatprep.subr.bf16.mxu0 0
  %53 = vmatpush1.bf16.msra.mxu0 0
  %54 = vmatprep.subr.bf16.mxu0 0
  %55 = vmatpush1.bf16.msra.mxu0 0
  %56 = vmatprep.subr.bf16.mxu0 0
  %57 = vmatpush1.bf16.msra.mxu0 0
  %58 = vmatprep.subr.bf16.mxu0 0
  %59 = vmatpush1.bf16.msra.mxu0 0
  %60 = vmatprep.subr.bf16.mxu0 0
  %61 = vmatpush1.bf16.msra.mxu0 0
  %62 = vmatprep.subr.bf16.mxu0 0
  %63 = vmatpush1.bf16.msra.mxu0 0
  %64 = vmatprep.subr.bf16.mxu0 0
  %65 = vmatpush1.bf16.msra.mxu0 0
  %66 = vmatprep.subr.bf16.mxu0 0
  %67 = vmatpush1.bf16.msra.mxu0 0
  %68 = vmatprep.subr.bf16.mxu0 0
  %69 = vmatpush1.bf16.msra.mxu0 0
  %70 = vmatprep.subr.bf16.mxu0 0
  %71 = vmatpush1.bf16.msra.mxu0 0
  %72 = vmatprep.subr.bf16.mxu0 0
  %73 = vmatpush1.bf16.msra.mxu0 0
  %74 = vmatprep.subr.bf16.mxu0 0
  %75 = vmatpush1.bf16.msra.mxu0 0
  %76 = vmatprep.subr.bf16.mxu0 0
  %77 = vmatpush1.bf16.msra.mxu0 0
  %78 = vmatprep.subr.bf16.mxu0 0
  %79 = vmatpush1.bf16.msra.mxu0 0
  %80 = vmatprep.mubr.bf16.mxu0 0
  %81 = vmatmul.mubr.bf16.gmra.mrb[0].mxu0 %v46
  %v82 = vpop.f32.mrb[0].mxu0
  %v83 = vadd.f32 %v36, %v82
  %v84 = vpop.f32.mrb[0].mxu0
  %v85 = vpop.f32.mrb[0].mxu0
  %v86 = vpop.f32.mrb[0].mxu0
  %87 = vdwg.mxu0
  %vm88 = vcmp.ge.f32.partialorder %v83, 0.0
  %v89 = vmul.f32 %v83, 0.01
  %v90 = vsel %vm88, %v83, %v89
  %v91 = vpack.c.bf16 %v90, %v90
  %v92 = vld [vmem:[%s3] sm:$0xf]
  %v93 = vld [vmem:[%s3 + $0x4] sm:$0xf]
  %v94 = vld [vmem:[%s3 + $0x8] sm:$0xf]
  %v95 = vld [vmem:[%s3 + $0xc] sm:$0xf]
  %v96 = vld [vmem:[%s3 + $0x10] sm:$0xf]
  %v97 = vld [vmem:[%s3 + $0x14] sm:$0xf]
  %v98 = vld [vmem:[%s3 + $0x18] sm:$0xf]
  %v99 = vld [vmem:[%s3 + $0x1c] sm:$0xf]
  %v100 = vld [vmem:[%s4] sm:$0x1]
  %v102 = vlaneseq
  %v103 = vshrl.u32 %v102, 7
  %v104 = vsub.s32 0, %v103
  %v105 = vrot.slane %v100, %v104
  %v115 = vunpack.c.l.b16 %v92
  %v116 = vunpack.c.l.b16 %v93
  %v117 = vunpack.c.l.b16 %v94
  %v118 = vunpack.c.l.b16 %v95
  %v119 = vunpack.c.l.b16 %v96
  %v120 = vunpack.c.l.b16 %v97
  %v121 = vunpack.c.l.b16 %v98
  %v122 = vunpack.c.l.b16 %v99
  %v123 = vpack.c.b16 %v116, %v115
  %v124 = vpack.c.b16 %v118, %v117
  %v125 = vpack.c.b16 %v120, %v119
  %v126 = vpack.c.b16 %v122, %v121
  %vm131 = vcmask 523264
  %v133 = vsel %vm131, %v91, 0
  %135 = vmatprep.subr.bf16.mxu0 0
  %136 = vmatpush1.bf16.msra.mxu0 %v123
  %137 = vmatprep.subr.bf16.mxu0 0
  %138 = vmatpush1.bf16.msra.mxu0 %v124
  %139 = vmatprep.subr.bf16.mxu0 0
  %140 = vmatpush1.bf16.msra.mxu0 %v125
  %141 = vmatprep.subr.bf16.mxu0 0
  %142 = vmatpush1.bf16.msra.mxu0 %v126
  %143 = vmatprep.subr.bf16.mxu0 0
  %144 = vmatpush1.bf16.msra.mxu0 0
  %145 = vmatprep.subr.bf16.mxu0 0
  %146 = vmatpush1.bf16.msra.mxu0 0
  %147 = vmatprep.subr.bf16.mxu0 0
  %148 = vmatpush1.bf16.msra.mxu0 0
  %149 = vmatprep.subr.bf16.mxu0 0
  %150 = vmatpush1.bf16.msra.mxu0 0
  %151 = vmatprep.subr.bf16.mxu0 0
  %152 = vmatpush1.bf16.msra.mxu0 0
  %153 = vmatprep.subr.bf16.mxu0 0
  %154 = vmatpush1.bf16.msra.mxu0 0
  %155 = vmatprep.subr.bf16.mxu0 0
  %156 = vmatpush1.bf16.msra.mxu0 0
  %157 = vmatprep.subr.bf16.mxu0 0
  %158 = vmatpush1.bf16.msra.mxu0 0
  %159 = vmatprep.subr.bf16.mxu0 0
  %160 = vmatpush1.bf16.msra.mxu0 0
  %161 = vmatprep.subr.bf16.mxu0 0
  %162 = vmatpush1.bf16.msra.mxu0 0
  %163 = vmatprep.subr.bf16.mxu0 0
  %164 = vmatpush1.bf16.msra.mxu0 0
  %165 = vmatprep.subr.bf16.mxu0 0
  %166 = vmatpush1.bf16.msra.mxu0 0
  %167 = vmatprep.mubr.bf16.mxu0 0
  %168 = vmatmul.mubr.bf16.gmra.mrb[0].mxu0 %v133
  %v169 = vpop.f32.mrb[0].mxu0
  %v170 = vadd.f32 %v105, %v169
  %v171 = vpop.f32.mrb[0].mxu0
  %v172 = vpop.f32.mrb[0].mxu0
  %v173 = vpop.f32.mrb[0].mxu0
  %174 = vdwg.mxu0
  %vm175 = vcmp.ge.f32.partialorder %v170, 0.0
  %v176 = vmul.f32 %v170, 0.01
  %v177 = vsel %vm175, %v170, %v176
  %v178 = vpack.c.bf16 %v177, %v177
  %v179 = vld [vmem:[%s5] sm:$0xf]
  %v180 = vld [vmem:[%s5 + $0x4] sm:$0xf]
  %v181 = vld [vmem:[%s5 + $0x8] sm:$0xf]
  %v182 = vld [vmem:[%s5 + $0xc] sm:$0xf]
  %v183 = vld [vmem:[%s5 + $0x10] sm:$0xf]
  %v184 = vld [vmem:[%s5 + $0x14] sm:$0xf]
  %v185 = vld [vmem:[%s5 + $0x18] sm:$0xf]
  %v186 = vld [vmem:[%s5 + $0x1c] sm:$0xf]
  %v187 = vld [vmem:[%s6] sm:$0x1]
  %v189 = vlaneseq
  %v190 = vshrl.u32 %v189, 7
  %v191 = vsub.s32 0, %v190
  %v192 = vrot.slane %v187, %v191
  %v202 = vunpack.c.l.b16 %v179
  %v203 = vunpack.c.l.b16 %v180
  %v204 = vunpack.c.l.b16 %v181
  %v205 = vunpack.c.l.b16 %v182
  %v206 = vunpack.c.l.b16 %v183
  %v207 = vunpack.c.l.b16 %v184
  %v208 = vunpack.c.l.b16 %v185
  %v209 = vunpack.c.l.b16 %v186
  %v210 = vpack.c.b16 %v203, %v202
  %v211 = vpack.c.b16 %v205, %v204
  %v212 = vpack.c.b16 %v207, %v206
  %v213 = vpack.c.b16 %v209, %v208
  %v219 = vsel %vm131, %v178, 0
  %221 = vmatprep.subr.bf16.mxu0 0
  %222 = vmatpush1.bf16.msra.mxu0 %v210
  %223 = vmatprep.subr.bf16.mxu0 0
  %224 = vmatpush1.bf16.msra.mxu0 %v211
  %225 = vmatprep.subr.bf16.mxu0 0
  %226 = vmatpush1.bf16.msra.mxu0 %v212
  %227 = vmatprep.subr.bf16.mxu0 0
  %228 = vmatpush1.bf16.msra.mxu0 %v213
  %229 = vmatprep.subr.bf16.mxu0 0
  %230 = vmatpush1.bf16.msra.mxu0 0
  %231 = vmatprep.subr.bf16.mxu0 0
  %232 = vmatpush1.bf16.msra.mxu0 0
  %233 = vmatprep.subr.bf16.mxu0 0
  %234 = vmatpush1.bf16.msra.mxu0 0
  %235 = vmatprep.subr.bf16.mxu0 0
  %236 = vmatpush1.bf16.msra.mxu0 0
  %237 = vmatprep.subr.bf16.mxu0 0
  %238 = vmatpush1.bf16.msra.mxu0 0
  %239 = vmatprep.subr.bf16.mxu0 0
  %240 = vmatpush1.bf16.msra.mxu0 0
  %241 = vmatprep.subr.bf16.mxu0 0
  %242 = vmatpush1.bf16.msra.mxu0 0
  %243 = vmatprep.subr.bf16.mxu0 0
  %244 = vmatpush1.bf16.msra.mxu0 0
  %245 = vmatprep.subr.bf16.mxu0 0
  %246 = vmatpush1.bf16.msra.mxu0 0
  %247 = vmatprep.subr.bf16.mxu0 0
  %248 = vmatpush1.bf16.msra.mxu0 0
  %249 = vmatprep.subr.bf16.mxu0 0
  %250 = vmatpush1.bf16.msra.mxu0 0
  %251 = vmatprep.subr.bf16.mxu0 0
  %252 = vmatpush1.bf16.msra.mxu0 0
  %253 = vmatprep.mubr.bf16.mxu0 0
  %254 = vmatmul.mubr.bf16.gmra.mrb[0].mxu0 %v219
  %v255 = vpop.f32.mrb[0].mxu0
  %v256 = vadd.f32 %v192, %v255
  %v257 = vpop.f32.mrb[0].mxu0
  %v258 = vpop.f32.mrb[0].mxu0
  %v259 = vpop.f32.mrb[0].mxu0
  %260 = vdwg.mxu0
  %v261 = vtanh.pop %v256
  %262 = vst [vmem:[%s7] sm:$0xff] %v261
  // Predicated region
  $region30: #{actor_forward.1} parent=0 // pred_check
    _
  $region31: #{actor_forward.1} parent=0 // pred_check_branch
    %264 = sbr.rel (0) target = $region33
  $region32: #{actor_forward.1} parent=0 // pred_region
    _
  $region33: #{actor_forward.1} parent=0 // pred_fallthru
    _
  // Predicated region
  $region34: #{actor_forward.1} parent=0 // pred_check
    _
  $region35: #{actor_forward.1} parent=0 // pred_check_branch
    %266 = sbr.rel (0) target = $region37
  $region36: #{actor_forward.1} parent=0 // pred_region
    _
  $region37: #{actor_forward.1} parent=0 // pred_fallthru
    _

</llo_original>
